<compile_context>
chip_gen: v6e
topology: v6e:2x2x1
jax: 0.10.0
libtpu: 0.0.40
codegen_flags: <defaults>
</compile_context>

<pallas_src>
import functools

import jax
import jax.numpy as jnp
from jax.experimental import pallas as pl
from jax.experimental.pallas import tpu as pltpu


# ----------------------------- Pallas kernel -------------------------------

def _mf_kernel(pu_ref, qi_ref, bu_ref, bi_ref, out_ref):
    """One batch tile with batch on the lane axis.

    pu_ref, qi_ref : (F, TB)  float32 VMEM tiles (factor rows, batch lanes)
    bu_ref, bi_ref : (1, TB)  float32 lane-dense bias rows
    out_ref        : (1, TB)  float32 lane-dense score row
    """
    prod = pu_ref[...] * qi_ref[...]                    # VPU elementwise (F, TB)
    dot = jnp.sum(prod, axis=0, keepdims=True)          # sublane reduce -> (1, TB)
    out_ref[...] = dot + bu_ref[...] + bi_ref[...]      # bias add, lane-dense store


def _mf_scores(p_u_t, q_i_t, b_u, b_i, *, tile_b):
    """Run the Pallas kernel on batch-padded, batch-on-lanes inputs.

    p_u_t, q_i_t : (F, B_pad) float32
    b_u, b_i     : (1, B_pad) float32
    returns      : (1, B_pad) float32 scores
    """
    f, b_pad = p_u_t.shape
    grid = (b_pad // tile_b,)
    fact_spec = pl.BlockSpec((f, tile_b), lambda i: (0, i))
    row_spec = pl.BlockSpec((1, tile_b), lambda i: (0, i))
    return pl.pallas_call(
        _mf_kernel,
        out_shape=jax.ShapeDtypeStruct((1, b_pad), jnp.float32),
        grid=grid,
        in_specs=[fact_spec, fact_spec, row_spec, row_spec],
        out_specs=row_spec,
        compiler_params=pltpu.CompilerParams(
            dimension_semantics=("parallel",)),
    )(p_u_t, q_i_t, b_u, b_i)


# ------------------------------ Module wrapper ------------------------------

class UnMaskMatrixFactorization:
    """JAX/Pallas port of the PyTorch UnMaskMatrixFactorization module."""

    def __init__(self, num_factors, num_users, num_items, key):
        k0, k1, k2, k3 = jax.random.split(key, 4)
        # nn.Embedding default init: weights ~ N(0, 1)
        self.user_factor_weight = jax.random.normal(
            k0, (num_users, num_factors), jnp.float32)
        self.item_factor_weight = jax.random.normal(
            k1, (num_items, num_factors), jnp.float32)
        self.user_bias = jax.random.normal(k2, (num_users, 1), jnp.float32)
        self.item_bias = jax.random.normal(k3, (num_items, 1), jnp.float32)

    @functools.partial(jax.jit, static_argnums=0)
    def forward(self, users_idx, items_idx):
        b = users_idx.shape[0]

        # Lane-aligned batch tile: multiple of 128, up to 1024 rows per step
        # (sweepable). Keeps >=2 grid steps once the batch exceeds one tile.
        b_pad128 = pl.cdiv(b, 128) * 128
        tile_b = min(1024, b_pad128)
        b_pad = pl.cdiv(b, tile_b) * tile_b
        pad = b_pad - b

        # Pad the cheap int32 index arrays (padded entries -> valid row 0),
        # not the gathered float tensors.
        u_idx = jnp.pad(users_idx.astype(jnp.int32), (0, pad))
        i_idx = jnp.pad(items_idx.astype(jnp.int32), (0, pad))

        # Embedding gather glue, transposed so the batch axis lands on lanes.
        # TODO(synk): fuse the gather into the kernel (scalar-prefetch indices +
        # manual DMA from pl.ANY embedding tables) to avoid materializing P/Q.
        p_u_t = jnp.take(self.user_factor_weight, u_idx, axis=0).T    # (F, B_pad)
        q_i_t = jnp.take(self.item_factor_weight, i_idx, axis=0).T    # (F, B_pad)
        b_u = jnp.take(self.user_bias[:, 0], u_idx, axis=0)[None, :]  # (1, B_pad)
        b_i = jnp.take(self.item_bias[:, 0], i_idx, axis=0)[None, :]  # (1, B_pad)

        scores = _mf_scores(p_u_t, q_i_t, b_u, b_i, tile_b=tile_b)    # (1, B_pad)
        return (scores[0, :b],)                                       # (B,)

    # Pure-JAX reference for validation.
    def forward_ref(self, users_idx, items_idx):
        p_u = jnp.take(self.user_factor_weight, users_idx, axis=0)
        q_i = jnp.take(self.item_factor_weight, items_idx, axis=0)
        b_u = jnp.take(self.user_bias, users_idx, axis=0)
        b_i = jnp.take(self.item_bias, items_idx, axis=0)
        return (((p_u * q_i).sum(axis=1, keepdims=True) + b_u + b_i).ravel(),)


# ---------------------------------- Main ------------------------------------

if __name__ == "__main__":
    num_factors, num_users, num_items = 32, 10, 20

    key = jax.random.PRNGKey(0)
    k_model, k_u, k_i = jax.random.split(key, 3)

    model = UnMaskMatrixFactorization(num_factors, num_users, num_items, k_model)

    # Small primary check (single grid step).
    batch = 16
    users_idx = jax.random.randint(k_u, (batch,), 0, num_users, dtype=jnp.int32)
    items_idx = jax.random.randint(k_i, (batch,), 0, num_items, dtype=jnp.int32)

    (scores_hat,) = model.forward(users_idx, items_idx)
    scores_hat = jax.block_until_ready(scores_hat)
    (scores_ref,) = model.forward_ref(users_idx, items_idx)
    assert scores_hat.shape == (batch,)
    assert scores_hat.dtype == jnp.float32
    assert jnp.allclose(scores_hat, scores_ref, atol=1e-5, rtol=1e-5)

    # Secondary check exercising batch padding + multi-step parallel grid.
    batch2 = 1500
    users_idx2 = jax.random.randint(k_u, (batch2,), 0, num_users, dtype=jnp.int32)
    items_idx2 = jax.random.randint(k_i, (batch2,), 0, num_items, dtype=jnp.int32)
    (scores_hat2,) = model.forward(users_idx2, items_idx2)
    scores_hat2 = jax.block_until_ready(scores_hat2)
    (scores_ref2,) = model.forward_ref(users_idx2, items_idx2)
    assert scores_hat2.shape == (batch2,)
    assert jnp.allclose(scores_hat2, scores_ref2, atol=1e-5, rtol=1e-5)

    print("KERNEL_OK")
</pallas_src>

<mosaic_0001>
module attributes {stable_mosaic.version = 11 : i64} {
  func.func @_mf_kernel(%arg0: i32, %arg1: memref<32x128xf32, #tpu.memory_space<vmem>>, %arg2: memref<32x128xf32, #tpu.memory_space<vmem>>, %arg3: memref<1x128xf32, #tpu.memory_space<vmem>>, %arg4: memref<1x128xf32, #tpu.memory_space<vmem>>, %arg5: memref<1x128xf32, #tpu.memory_space<vmem>>) attributes {dimension_semantics = [#tpu.dimension_semantics<parallel>], iteration_bounds = array<i64: 1>, scalar_prefetch = 0 : i64, scratch_operands = 0 : i64, tpu.core_type = #tpu.core_type<tc>, window_params = [{transform_indices = @transform_0, window_bounds = array<i64: 32, 128>}, {transform_indices = @transform_1, window_bounds = array<i64: 32, 128>}, {transform_indices = @transform_2, window_bounds = array<i64: 1, 128>}, {transform_indices = @transform_3, window_bounds = array<i64: 1, 128>}, {transform_indices = @transform_4, window_bounds = array<i64: 1, 128>}]} {
    %c0 = arith.constant 0 : index
    %c0_0 = arith.constant 0 : index
    %0 = vector.load %arg1[%c0, %c0_0] : memref<32x128xf32, #tpu.memory_space<vmem>>, vector<32x128xf32>
    %c0_1 = arith.constant 0 : index
    %c0_2 = arith.constant 0 : index
    %1 = vector.load %arg2[%c0_1, %c0_2] : memref<32x128xf32, #tpu.memory_space<vmem>>, vector<32x128xf32>
    %2 = arith.mulf %0, %1 : vector<32x128xf32>
    %cst = arith.constant dense<0.000000e+00> : vector<128xf32>
    %3 = vector.multi_reduction <add>, %2, %cst [0] : vector<32x128xf32> to vector<128xf32>
    %4 = vector.shape_cast %3 : vector<128xf32> to vector<1x128xf32>
    %c0_3 = arith.constant 0 : index
    %c0_4 = arith.constant 0 : index
    %5 = vector.load %arg3[%c0_3, %c0_4] : memref<1x128xf32, #tpu.memory_space<vmem>>, vector<1x128xf32>
    %6 = arith.addf %4, %5 : vector<1x128xf32>
    %c0_5 = arith.constant 0 : index
    %c0_6 = arith.constant 0 : index
    %7 = vector.load %arg4[%c0_5, %c0_6] : memref<1x128xf32, #tpu.memory_space<vmem>>, vector<1x128xf32>
    %8 = arith.addf %6, %7 : vector<1x128xf32>
    %c0_7 = arith.constant 0 : index
    %c0_8 = arith.constant 0 : index
    %9 = vector.load %arg5[%c0_7, %c0_8] : memref<1x128xf32, #tpu.memory_space<vmem>>, vector<1x128xf32>
    tpu.vector_store %arg5[%c0_7, %c0_8], %8 {strides = array<i32>} : memref<1x128xf32, #tpu.memory_space<vmem>>, vector<1x128xf32>,
    return
  }
  func.func @transform_0(%arg0: i32) -> (i32, i32) {
    %c0_i32 = arith.constant 0 : i32
    %c0_i32_0 = arith.constant 0 : i32
    return %c0_i32, %arg0 : i32, i32
  }
  func.func @transform_1(%arg0: i32) -> (i32, i32) {
    %c0_i32 = arith.constant 0 : i32
    %c0_i32_0 = arith.constant 0 : i32
    return %c0_i32, %arg0 : i32, i32
  }
  func.func @transform_2(%arg0: i32) -> (i32, i32) {
    %c0_i32 = arith.constant 0 : i32
    %c0_i32_0 = arith.constant 0 : i32
    return %c0_i32, %arg0 : i32, i32
  }
  func.func @transform_3(%arg0: i32) -> (i32, i32) {
    %c0_i32 = arith.constant 0 : i32
    %c0_i32_0 = arith.constant 0 : i32
    return %c0_i32, %arg0 : i32, i32
  }
  func.func @transform_4(%arg0: i32) -> (i32, i32) {
    %c0_i32 = arith.constant 0 : i32
    %c0_i32_0 = arith.constant 0 : i32
    return %c0_i32, %arg0 : i32, i32
  }
}

</mosaic_0001>

<llo_original>
// kernel: forward.1
$region0: #{forward.1}
  #allocation0 [shape = 'u32[]', space=smem, size = 0x4, offset = 0x4, fixed_abs, tag = 'smem constant byte address 0x4 - core index']
  #allocation1 [shape = 'u32[144,128]{1,0:T(1,128)}', space=vmem, size = 0x12000, scoped, tag = 'internal scratch']
  %s0 = inlined_call_operand.vmem [shape: f32[32,128], index: 0, kind: input, shape index: {}]
  %s1 = inlined_call_operand.vmem [shape: f32[32,128], index: 1, kind: input, shape index: {}]
  %s2 = inlined_call_operand.vmem [shape: f32[1,128], index: 2, kind: input, shape index: {}]
  %s3 = inlined_call_operand.vmem [shape: f32[1,128], index: 3, kind: input, shape index: {}]
  %s4 = inlined_call_operand.vmem [shape: f32[1,128], index: 4, kind: output, shape index: {}]
  %s5 = sld [smem:[#allocation0]]
  $region26: #{forward.1} parent=0
    _
  %s7 = ssub.s32 1, %s5
  %s8 = scalar_select 0, %s7, %s5
  // Predicated region
  $region2: #{forward.1} parent=0 // pred_check
    _
  $region3: #{forward.1} parent=0 // pred_check_branch
    %10 = sbr.rel (0) target = $region5
  $region4: #{forward.1} parent=0 // pred_region
    _
  $region5: #{forward.1} parent=0 // pred_fallthru
    _
  // Predicated region
  $region6: #{forward.1} parent=0 // pred_check
    _
  $region7: #{forward.1} parent=0 // pred_check_branch
    %12 = sbr.rel (0) target = $region9
  $region8: #{forward.1} parent=0 // pred_region
    _
  $region9: #{forward.1} parent=0 // pred_fallthru
    _
  // Predicated region
  $region10: #{forward.1} parent=0 // pred_check
    _
  $region11: #{forward.1} parent=0 // pred_check_branch
    %14 = sbr.rel (0) target = $region13
  $region12: #{forward.1} parent=0 // pred_region
    _
  $region13: #{forward.1} parent=0 // pred_fallthru
    _
  // Predicated region
  $region14: #{forward.1} parent=0 // pred_check
    _
  $region15: #{forward.1} parent=0 // pred_check_branch
    %16 = sbr.rel (0) target = $region17
  $region16: #{forward.1} parent=0 // pred_region
    _
  $region17: #{forward.1} parent=0 // pred_fallthru
    _
  %v17 = vld [vmem:[%s0] sm:$0xff]
  %v18 = vld [vmem:[%s0 + $0x8] sm:$0xff]
  %v19 = vld [vmem:[%s0 + $0x10] sm:$0xff]
  %v20 = vld [vmem:[%s0 + $0x18] sm:$0xff]
  %v21 = vld [vmem:[%s1] sm:$0xff]
  %v22 = vld [vmem:[%s1 + $0x8] sm:$0xff]
  %v23 = vld [vmem:[%s1 + $0x10] sm:$0xff]
  %v24 = vld [vmem:[%s1 + $0x18] sm:$0xff]
  %v25 = vmul.f32 %v17, %v21
  %v26 = vmul.f32 %v18, %v22
  %v27 = vmul.f32 %v19, %v23
  %v28 = vmul.f32 %v20, %v24
  %v29 = vadd.f32 %v25, %v26
  %v30 = vadd.f32 %v29, %v27
  %v31 = vadd.f32 %v30, %v28
  %v32 = vrot.slane %v31, 4
  %v33 = vadd.f32 %v31, %v32
  %v34 = vrot.slane %v33, 2
  %v35 = vadd.f32 %v33, %v34
  %v36 = vrot.slane %v35, 1
  %v37 = vadd.f32 %v35, %v36
  %v38 = vld [vmem:[%s2] sm:$0x1]
  %v39 = vadd.f32 %v37, %v38
  %v40 = vld [vmem:[%s3] sm:$0x1]
  %v41 = vadd.f32 %v39, %v40
  %42 = vst [vmem:[%s4] sm:$0x1] %v41
  // Predicated region
  $region18: #{forward.1} parent=0 // pred_check
    _
  $region19: #{forward.1} parent=0 // pred_check_branch
    %44 = sbr.rel (0) target = $region21
  $region20: #{forward.1} parent=0 // pred_region
    _
  $region21: #{forward.1} parent=0 // pred_fallthru
    _
  // Predicated region
  $region22: #{forward.1} parent=0 // pred_check
    _
  $region23: #{forward.1} parent=0 // pred_check_branch
    %46 = sbr.rel (0) target = $region25
  $region24: #{forward.1} parent=0 // pred_region
    _
  $region25: #{forward.1} parent=0 // pred_fallthru
    _

</llo_original>
